<compile_context>
chip_gen: v6e
topology: v6e:2x2x1
jax: 0.10.0
libtpu: 0.0.40
codegen_flags: <defaults>
</compile_context>

<pallas_src>
import math
from functools import partial

import jax
import jax.numpy as jnp
from jax.experimental import pallas as pl
from jax.experimental.pallas import tpu as pltpu


def _conv2d_wm_kernel(w_ref, s_ref, p_ref, o_ref, wmod_ref, *,
                      c_scale, demodulate, eps):
    # w_ref    : (O, I*K*K)       shared flattened equalized-LR weight
    # s_ref    : (1, 1, I*K*K)    per-sample style (repeated K*K per channel)
    # p_ref    : (1, I*K*K, HWT)  per-sample im2col slab, one spatial tile
    # o_ref    : (1, O, HWT)      lane-dense output tile
    # wmod_ref : (O, I*K*K)       VMEM scratch, persists across grid steps

    # Modulate + demodulate once per sample (first spatial tile only).
    @pl.when(pl.program_id(1) == 0)
    def _():
        w = w_ref[...].astype(jnp.float32) * c_scale          # (O, IKK)
        wm = w * s_ref[0].astype(jnp.float32)                 # * (1, IKK)
        if demodulate:
            sigma_inv = jax.lax.rsqrt(
                jnp.sum(wm * wm, axis=-1, keepdims=True) + eps)   # (O, 1)
            wm = wm * sigma_inv
        wmod_ref[...] = wm.astype(wmod_ref.dtype)

    # Single fused matmul: (O, I*K*K) @ (I*K*K, HWT) with f32 accumulation.
    acc = jnp.dot(wmod_ref[...], p_ref[0],
                  preferred_element_type=jnp.float32)          # (O, HWT)
    o_ref[0] = acc.astype(o_ref.dtype)


def conv2d_weight_modulate(x, s, weight, *, demodulate=True, eps=1e-8,
                           compute_dtype=None, block_hw=512):
    """StyleGAN2 modulated conv. x: (b, I, H, W), s: (b, I), weight: (O, I, K, K)."""
    b, in_f, H, W = x.shape
    out_f, in_f2, K, K2 = weight.shape
    assert in_f == in_f2 and K == K2
    pad = (K - 1) // 2
    c_scale = 1.0 / math.sqrt(in_f * K * K)
    HW = H * W
    IKK = in_f * K * K
    if compute_dtype is None:
        compute_dtype = x.dtype

    # Spatial tile (lane-dense, multiple of 128); fall back to full H*W.
    if (block_hw is None or block_hw >= HW
            or HW % block_hw != 0 or block_hw % 128 != 0):
        block_hw = HW
    n_hw = HW // block_hw

    # ---- glue: lane-dense im2col slab + flattened weight / style -----------
    x_pad = jnp.pad(x, ((0, 0), (0, 0), (pad, pad), (pad, pad)))
    taps = [x_pad[:, :, kh:kh + H, kw:kw + W]
            for kh in range(K) for kw in range(K)]             # each (b, I, H, W)
    patches = jnp.stack(taps, axis=2)                          # (b, I, K*K, H, W)
    patches = patches.reshape(b, IKK, HW).astype(compute_dtype)

    w_flat = weight.reshape(out_f, IKK)                        # (O, I*K*K)
    s_rep = jnp.repeat(s, K * K, axis=1).reshape(b, 1, IKK)    # (b, 1, I*K*K)

    kernel = partial(_conv2d_wm_kernel, c_scale=c_scale,
                     demodulate=demodulate, eps=eps)

    out_flat = pl.pallas_call(
        kernel,
        out_shape=jax.ShapeDtypeStruct((b, out_f, HW), x.dtype),
        grid_spec=pltpu.PrefetchScalarGridSpec(
            num_scalar_prefetch=0,
            grid=(b, n_hw),
            in_specs=[
                # shared flattened weight, same block every grid step
                pl.BlockSpec((out_f, IKK), lambda i, j: (0, 0)),
                # per-sample style vector (repeated per tap)
                pl.BlockSpec((1, 1, IKK), lambda i, j: (i, 0, 0)),
                # per-sample im2col slab, one lane-dense spatial tile
                pl.BlockSpec((1, IKK, block_hw), lambda i, j: (i, 0, j)),
            ],
            out_specs=pl.BlockSpec((1, out_f, block_hw), lambda i, j: (i, 0, j)),
            scratch_shapes=[pltpu.VMEM((out_f, IKK), compute_dtype)],
        ),
        compiler_params=pltpu.CompilerParams(
            dimension_semantics=("parallel", "arbitrary"),
            vmem_limit_bytes=48 * 1024 * 1024),
    )(w_flat, s_rep, patches)

    # Glue: reshape the lane-dense result back to NCHW.
    return out_flat.reshape(b, out_f, H, W)


def _reference(x, s, weight, demodulate=True, eps=1e-8):
    """Pure-JAX replica of the PyTorch forward (correctness check)."""
    b, in_f, H, W = x.shape
    out_f, _, K, _ = weight.shape
    c = 1.0 / math.sqrt(in_f * K * K)
    w = weight * c
    wm = w[None] * s[:, None, :, None, None]                   # (b, O, I, K, K)
    if demodulate:
        sigma_inv = jax.lax.rsqrt(
            jnp.sum(wm ** 2, axis=(2, 3, 4), keepdims=True) + eps)
        wm = wm * sigma_inv
    outs = []
    for i in range(b):
        y = jax.lax.conv_general_dilated(
            x[i:i + 1], wm[i], window_strides=(1, 1), padding="SAME",
            dimension_numbers=("NCHW", "OIHW", "NCHW"))
        outs.append(y)
    return jnp.concatenate(outs, axis=0)


if __name__ == "__main__":
    key = jax.random.PRNGKey(0)
    k_x, k_s, k_w = jax.random.split(key, 3)

    b, in_features, out_features, K, H, W = 2, 4, 8, 3, 16, 16

    x = jax.random.normal(k_x, (b, in_features, H, W), dtype=jnp.float32)
    s = jax.random.normal(k_s, (b, in_features), dtype=jnp.float32)
    # EqualizedWeight parameter: torch.randn([out, in, K, K]) analogue.
    weight = jax.random.normal(
        k_w, (out_features, in_features, K, K), dtype=jnp.float32)

    ref = _reference(x, s, weight, demodulate=True, eps=1e-8)

    # f32 path with 2 spatial tiles (exercises the pl.when modulation hoist).
    out = conv2d_weight_modulate(x, s, weight, demodulate=True, eps=1e-8,
                                 block_hw=128)
    out = jax.block_until_ready(out)
    assert out.shape == (b, out_features, H, W)
    assert jnp.allclose(out, ref, atol=1e-4, rtol=1e-4), (
        float(jnp.max(jnp.abs(out - ref))))

    # bf16-operand path (v6e/v7x MXU fast path), f32 accumulation.
    out_bf16 = conv2d_weight_modulate(x, s, weight, demodulate=True, eps=1e-8,
                                      compute_dtype=jnp.bfloat16)
    out_bf16 = jax.block_until_ready(out_bf16)
    assert jnp.allclose(out_bf16, ref, atol=1e-1, rtol=1e-1), (
        float(jnp.max(jnp.abs(out_bf16 - ref))))

    print("KERNEL_OK")
</pallas_src>

<mosaic_0001>
module attributes {stable_mosaic.version = 11 : i64} {
  func.func @_conv2d_wm_kernel(%arg0: i32, %arg1: i32, %arg2: memref<8x36xf32, #tpu.memory_space<vmem>>, %arg3: memref<1x1x36xf32, #tpu.memory_space<vmem>>, %arg4: memref<1x36x128xf32, #tpu.memory_space<vmem>>, %arg5: memref<1x8x128xf32, #tpu.memory_space<vmem>>, %arg6: memref<8x36xf32, #tpu.memory_space<vmem>>) attributes {dimension_semantics = [#tpu.dimension_semantics<parallel>, #tpu.dimension_semantics<arbitrary>], iteration_bounds = array<i64: 2, 2>, scalar_prefetch = 0 : i64, scratch_operands = 1 : i64, tpu.core_type = #tpu.core_type<tc>, window_params = [{pipeline_mode = #tpu.pipeline_mode<synchronous>, transform_indices = @transform_0, window_bounds = array<i64: 8, 36>}, {transform_indices = @transform_1, window_bounds = array<i64: 1, 1, 36>}, {transform_indices = @transform_2, window_bounds = array<i64: 1, 36, 128>}, {transform_indices = @transform_3, window_bounds = array<i64: 1, 8, 128>}]} {
    %c0_i32 = arith.constant 0 : i32
    %0 = arith.cmpi eq, %arg1, %c0_i32 : i32
    %1 = arith.extui %0 : i1 to i32
    %c0_i32_0 = arith.constant 0 : i32
    %2 = arith.cmpi ne, %1, %c0_i32_0 : i32
    scf.if %2 {
      %c0_8 = arith.constant 0 : index
      %c0_9 = arith.constant 0 : index
      %10 = vector.load %arg2[%c0_8, %c0_9] : memref<8x36xf32, #tpu.memory_space<vmem>>, vector<8x36xf32>
      %cst_10 = arith.constant 0.166666672 : f32
      %11 = vector.broadcast %cst_10 : f32 to vector<8x36xf32>
      %12 = arith.mulf %10, %11 : vector<8x36xf32>
      %c0_11 = arith.constant 0 : index
      %c0_12 = arith.constant 0 : index
      %c0_13 = arith.constant 0 : index
      %13 = vector.load %arg3[%c0_11, %c0_12, %c0_13] : memref<1x1x36xf32, #tpu.memory_space<vmem>>, vector<1x1x36xf32>
      %14 = vector.shape_cast %13 : vector<1x1x36xf32> to vector<1x36xf32>
      %15 = vector.broadcast %14 : vector<1x36xf32> to vector<8x36xf32>
      %16 = arith.mulf %12, %15 : vector<8x36xf32>
      %17 = arith.mulf %16, %16 : vector<8x36xf32>
      %cst_14 = arith.constant dense<0.000000e+00> : vector<8xf32>
      %18 = vector.multi_reduction <add>, %17, %cst_14 [1] : vector<8x36xf32> to vector<8xf32>
      %19 = vector.shape_cast %18 : vector<8xf32> to vector<8x1xf32>
      %cst_15 = arith.constant 9.99999993E-9 : f32
      %20 = vector.broadcast %cst_15 : f32 to vector<8x1xf32>
      %21 = arith.addf %19, %20 : vector<8x1xf32>
      %22 = math.rsqrt %21 : vector<8x1xf32>
      %23 = vector.broadcast %22 : vector<8x1xf32> to vector<8x36xf32>
      %24 = arith.mulf %16, %23 : vector<8x36xf32>
      %c0_16 = arith.constant 0 : index
      %c0_17 = arith.constant 0 : index
      %25 = vector.load %arg6[%c0_16, %c0_17] : memref<8x36xf32, #tpu.memory_space<vmem>>, vector<8x36xf32>
      tpu.vector_store %arg6[%c0_16, %c0_17], %24 {strides = array<i32>} : memref<8x36xf32, #tpu.memory_space<vmem>>, vector<8x36xf32>,
    } else {
    }
    %c0 = arith.constant 0 : index
    %c0_1 = arith.constant 0 : index
    %3 = vector.load %arg6[%c0, %c0_1] : memref<8x36xf32, #tpu.memory_space<vmem>>, vector<8x36xf32>
    %c0_2 = arith.constant 0 : index
    %c0_3 = arith.constant 0 : index
    %c0_4 = arith.constant 0 : index
    %4 = vector.load %arg4[%c0_2, %c0_3, %c0_4] : memref<1x36x128xf32, #tpu.memory_space<vmem>>, vector<1x36x128xf32>
    %5 = vector.shape_cast %4 : vector<1x36x128xf32> to vector<36x128xf32>
    %cst = arith.constant dense<0.000000e+00> : vector<8x128xf32>
    %6 = tpu.matmul %3, %5, %cst {dimension_numbers = #tpu.dot_dimension_numbers<[1], [0], [0], [1], [0, 0, 1, 1], [], []>} : vector<8x36xf32>, vector<36x128xf32>, vector<8x128xf32> -> vector<8x128xf32>
    %c0_5 = arith.constant 0 : index
    %c0_6 = arith.constant 0 : index
    %c0_7 = arith.constant 0 : index
    %7 = vector.load %arg5[%c0_5, %c0_6, %c0_7] : memref<1x8x128xf32, #tpu.memory_space<vmem>>, vector<1x8x128xf32>
    %8 = vector.shape_cast %7 : vector<1x8x128xf32> to vector<8x128xf32>
    %9 = vector.shape_cast %6 : vector<8x128xf32> to vector<1x8x128xf32>
    tpu.vector_store %arg5[%c0_5, %c0_6, %c0_7], %9 {strides = array<i32>} : memref<1x8x128xf32, #tpu.memory_space<vmem>>, vector<1x8x128xf32>,
    return
  }
  func.func @transform_0(%arg0: i32, %arg1: i32) -> (i32, i32) {
    %c0_i32 = arith.constant 0 : i32
    %c0_i32_0 = arith.constant 0 : i32
    %c0_i32_1 = arith.constant 0 : i32
    return %c0_i32, %c0_i32_0 : i32, i32
  }
  func.func @transform_1(%arg0: i32, %arg1: i32) -> (i32, i32, i32) {
    %c0_i32 = arith.constant 0 : i32
    %c0_i32_0 = arith.constant 0 : i32
    %c0_i32_1 = arith.constant 0 : i32
    return %arg0, %c0_i32, %c0_i32_0 : i32, i32, i32
  }
  func.func @transform_2(%arg0: i32, %arg1: i32) -> (i32, i32, i32) {
    %c0_i32 = arith.constant 0 : i32
    %c0_i32_0 = arith.constant 0 : i32
    return %arg0, %c0_i32, %arg1 : i32, i32, i32
  }
  func.func @transform_3(%arg0: i32, %arg1: i32) -> (i32, i32, i32) {
    %c0_i32 = arith.constant 0 : i32
    %c0_i32_0 = arith.constant 0 : i32
    return %arg0, %c0_i32, %arg1 : i32, i32, i32
  }
}

</mosaic_0001>

<llo_original>
// kernel: tpu_custom_call.1
$region0: #{tpu_custom_call.1}
  #allocation0 [shape = 'u32[]', space=smem, size = 0x4, offset = 0x4, fixed_abs, tag = 'smem constant byte address 0x4 - core index']
  #allocation1 [shape = 'u32[144,128]{1,0:T(1,128)}', space=vmem, size = 0x12000, scoped, tag = 'internal scratch']
  #allocation2 [shape = 'f32[8,36]{1,0:T(8,128)}', space=vmem, size = 0x1000, scoped, tag = 'scratch operand']
  %s0 = inlined_call_operand.vmem [shape: f32[8,36], index: 0, kind: input, shape index: {}]
  %s1 = inlined_call_operand.vmem [shape: f32[2,1,36], index: 1, kind: input, shape index: {}]
  %s2 = inlined_call_operand.vmem [shape: f32[2,36,256], index: 2, kind: input, shape index: {}]
  %s3 = inlined_call_operand.hbm [shape: f32[2,8,256], index: 3, kind: output, shape index: {}]
  %s4 = sld [smem:[#allocation0]]
  $region87: #{tpu_custom_call.1} parent=0
    _
  %s6 = ssub.s32 1, %s4
  %s7 = scalar_select 0, %s6, %s4
  $region1: #{tpu_custom_call.1} parent=0
    #allocation3 [shape = 'u8[40960]{0}', space=vmem, size = 0xa000, scoped, tag = 'input window, operand 2']
    #allocation4 [shape = 'u8[8192]{0}', space=vmem, size = 0x2000, scoped, tag = 'output window, operand 0']
    #allocation5 [shape = 's32[2]{0}', space=sflag, size = 0x8, scoped, tag = 'scoped memory for tpu_custom_call.1']
    %8 = vsyncpa [#allocation5], 0
    %s9 = scalar_lea.sflag [#allocation5], 1
    %10 = vsyncpa %s9, 0
    loop: start=0, step=1, limit=6
    $region2: #{tpu_custom_call.1} parent=1 // loop_pre_header
      _
    $region3: #{tpu_custom_call.1} parent=1 // loop_header
      %s12 = sphi 0, %s16
      %p13 = scmp.ge.s32.totalorder %s12, 6
      %s19 = sphi 0, %s31
      %s20 = sphi 0, %s27
      %s21 = sphi 0, %s19
      %s22 = sphi 0, %s20
      %s23 = sphi 0, %s21
      %s24 = sphi 0, %s22
      %s32 = sphi 0, %s32
      %s34 = sphi 0, %s32
      %s35 = sphi 0, %s34
      %s49 = sphi 0, %s35
      %s55 = sphi 0, %s57
      %s58 = sphi 0, %s55
      %s59 = sphi 0, %s58
      %s75 = sphi 0, %s59
      %s83 = sphi 0, %s85
      %s86 = sphi 0, %s83
      %s87 = sphi 0, %s86
      %s103 = sphi 0, %s87
      %s111 = sphi 0, %s113
      %s114 = sphi 0, %s111
      %s115 = sphi 0, %s114
      %s131 = sphi 0, %s115
    $region4: #{tpu_custom_call.1} parent=1 // loop_header_branch
      %15 = sbr.rel (%p13) target = $region8
    $region5: #{tpu_custom_call.1} parent=1 // loop_body
      %s17 = ssub.s32 %s12, 1
      %s18 = ssub.s32 %s12, 2
      %s25 = sadd.s32 1, %s20
      %p26 = scmp.ge.s32.totalorder %s25, 2
      %s27 = scalar_select %p26, 0, %s25
      %s28 = sadd.s32 1, %s19
      %s29 = scalar_select %p26, %s28, %s19
      %p30 = scmp.ge.s32.totalorder %s29, 2
      %s31 = scalar_select %p30, 0, %s29
      %s33 = sadd.s32 %s32, 1
      %p36 = scmp.eq.s32.totalorder %s12, 3
      %p37 = scmp.ne.s32.totalorder %s32, %s34
      %p38 = scmp.eq.s32.totalorder %s12, 0
      %p39 = por %p37, %p38
      %p40 = scmp.ne.s32.totalorder %s32, %s34
      %p41 = scmp.eq.s32.totalorder %s17, 3
      %p42 = por %p40, %p41
      %p43 = scmp.ne.s32.totalorder %s34, %s35
      %p44 = scmp.eq.s32.totalorder %s17, 0
      %p45 = por %p43, %p44
      %p46 = scmp.ne.s32.totalorder %s34, %s35
      %p47 = scmp.eq.s32.totalorder %s18, 3
      %p48 = por %p46, %p47
      %p50 = scmp.ne.s32.totalorder %s35, %s49
      %p51 = scmp.eq.s32.totalorder %s18, 0
      %p52 = por %p50, %p51
      %s53 = ssub.s32 %s19, %s31
      %p54 = scmp.eq.s32.totalorder %s53, 0
      %s56 = sadd.s32 %s55, 1
      %s57 = scalar_select %p54, %s55, %s56
      %p60 = pneg %p54
      %p61 = scmp.eq.s32.totalorder %s12, 3
      %p62 = por %p60, %p61
      %p63 = scmp.ne.s32.totalorder %s55, %s58
      %p64 = scmp.eq.s32.totalorder %s12, 0
      %p65 = por %p63, %p64
      %p66 = scmp.ne.s32.totalorder %s55, %s58
      %p67 = scmp.eq.s32.totalorder %s17, 3
      %p68 = por %p66, %p67
      %p69 = scmp.ne.s32.totalorder %s58, %s59
      %p70 = scmp.eq.s32.totalorder %s17, 0
      %p71 = por %p69, %p70
      %p72 = scmp.ne.s32.totalorder %s58, %s59
      %p73 = scmp.eq.s32.totalorder %s18, 3
      %p74 = por %p72, %p73
      %p76 = scmp.ne.s32.totalorder %s59, %s75
      %p77 = scmp.eq.s32.totalorder %s18, 0
      %p78 = por %p76, %p77
      %s79 = ssub.s32 %s19, %s31
      %s80 = ssub.s32 %s20, %s27
      %s81 = sor.u32 %s79, %s80
      %p82 = scmp.eq.s32.totalorder %s81, 0
      %s84 = sadd.s32 %s83, 1
      %s85 = scalar_select %p82, %s83, %s84
      %p88 = pneg %p82
      %p89 = scmp.eq.s32.totalorder %s12, 3
      %p90 = por %p88, %p89
      %p91 = scmp.ne.s32.totalorder %s83, %s86
      %p92 = scmp.eq.s32.totalorder %s12, 0
      %p93 = por %p91, %p92
      %p94 = scmp.ne.s32.totalorder %s83, %s86
      %p95 = scmp.eq.s32.totalorder %s17, 3
      %p96 = por %p94, %p95
      %p97 = scmp.ne.s32.totalorder %s86, %s87
      %p98 = scmp.eq.s32.totalorder %s17, 0
      %p99 = por %p97, %p98
      %p100 = scmp.ne.s32.totalorder %s86, %s87
      %p101 = scmp.eq.s32.totalorder %s18, 3
      %p102 = por %p100, %p101
      %p104 = scmp.ne.s32.totalorder %s87, %s103
      %p105 = scmp.eq.s32.totalorder %s18, 0
      %p106 = por %p104, %p105
      %s107 = ssub.s32 %s19, %s31
      %s108 = ssub.s32 %s20, %s27
      %s109 = sor.u32 %s107, %s108
      %p110 = scmp.eq.s32.totalorder %s109, 0
      %s112 = sadd.s32 %s111, 1
      %s113 = scalar_select %p110, %s111, %s112
      %p116 = pneg %p110
      %p117 = scmp.eq.s32.totalorder %s12, 3
      %p118 = por %p116, %p117
      %p119 = scmp.ne.s32.totalorder %s111, %s114
      %p120 = scmp.eq.s32.totalorder %s12, 0
      %p121 = por %p119, %p120
      %p122 = scmp.ne.s32.totalorder %s111, %s114
      %p123 = scmp.eq.s32.totalorder %s17, 3
      %p124 = por %p122, %p123
      %p125 = scmp.ne.s32.totalorder %s114, %s115
      %p126 = scmp.eq.s32.totalorder %s17, 0
      %p127 = por %p125, %p126
      %p128 = scmp.ne.s32.totalorder %s114, %s115
      %p129 = scmp.eq.s32.totalorder %s18, 3
      %p130 = por %p128, %p129
      %p132 = scmp.ne.s32.totalorder %s115, %s131
      %p133 = scmp.eq.s32.totalorder %s18, 0
      %p134 = por %p132, %p133
      %p135 = scmp.le.s32.totalorder 1, %s12
      %p136 = scmp.lt.s32.totalorder %s12, 5
      %p137 = pnand %p135, %p136
      %p138 = pneg %p137
      // Predicated region
      $region9: #{tpu_custom_call.1} parent=5 // pred_check
        _
      $region10: #{tpu_custom_call.1} parent=5 // pred_check_branch
        %140 = sbr.rel (%p137) target = $region12
      $region11: #{tpu_custom_call.1} parent=5 // pred_region
        %s141 = ssub.s32 %s12, 1
        // Predicated region
        $region13: #{tpu_custom_call.1} parent=11 // pred_check
          %p142 = pneg %p45
        $region14: #{tpu_custom_call.1} parent=11 // pred_check_branch
          %144 = sbr.rel (%p142) target = $region16
        $region15: #{tpu_custom_call.1} parent=11 // pred_region
          _
        $region16: #{tpu_custom_call.1} parent=11 // pred_fallthru
          _
      $region12: #{tpu_custom_call.1} parent=5 // pred_fallthru
        _
      %p145 = scmp.lt.s32.totalorder %s12, 4
      // Predicated region
      $region17: #{tpu_custom_call.1} parent=5 // pred_check
        %p146 = pneg %p145
      $region18: #{tpu_custom_call.1} parent=5 // pred_check_branch
        %148 = sbr.rel (%p146) target = $region20
      $region19: #{tpu_custom_call.1} parent=5 // pred_region
        // Predicated region
        $region21: #{tpu_custom_call.1} parent=19 // pred_check
          %p149 = pneg %p65
        $region22: #{tpu_custom_call.1} parent=19 // pred_check_branch
          %151 = sbr.rel (%p149) target = $region24
        $region23: #{tpu_custom_call.1} parent=19 // pred_region
          %p152 = scmp.lt.s32.totalorder %s19, 1
          %s153 = scalar_select %p152, %s19, 1
          %s154 = scalar_lea.vmem %s1, %s153
        $region24: #{tpu_custom_call.1} parent=19 // pred_fallthru
          _
        // Predicated region
        $region25: #{tpu_custom_call.1} parent=19 // pred_check
          %p155 = pneg %p93
        $region26: #{tpu_custom_call.1} parent=19 // pred_check_branch
          %157 = sbr.rel (%p155) target = $region28
        $region27: #{tpu_custom_call.1} parent=19 // pred_region
          %s158 = sand.u32 %s83, 1
          %s159 = sand.u32 %s83, 1
          %s160 = smul.addr %s159, 40
          %s161 = scalar_lea.vmem [#allocation3], %s160
          %s162 = smul.addr %s19, 10
          %s163 = sadd.s32 %s20, %s162
          %s164 = smul.addr %s163, 8
          %s165 = scalar_lea.vmem %s2, %s164
          // Predicated region
          $region29: #{tpu_custom_call.1} parent=27 // pred_check
            _
          $region30: #{tpu_custom_call.1} parent=27 // pred_check_branch
            %167 = sbr.rel (0) target = $region32
          $region31: #{tpu_custom_call.1} parent=27 // pred_region
            // Predicated region
            $region33: #{tpu_custom_call.1} parent=31 // pred_check
              _
            $region34: #{tpu_custom_call.1} parent=31 // pred_check_branch
              %169 = sbr.rel (0) target = $region36
            $region35: #{tpu_custom_call.1} parent=31 // pred_region
              // Predicated region
              $region48: #{tpu_custom_call.1} parent=35 // pred_check
                _
              $region49: #{tpu_custom_call.1} parent=35 // pred_check_branch
                %193 = sbr.rel (0) target = $region51
              $region50: #{tpu_custom_call.1} parent=35 // pred_region
                loop: start=0, step=1, limit=1
                $region52: #{tpu_custom_call.1} parent=50 // loop_pre_header
                  _
                $region53: #{tpu_custom_call.1} parent=50 // loop_header
                  %s195 = sphi 0, %s199
                  %p196 = scmp.ge.s32.totalorder %s195, 1
                  %s200 = sphi %s165, %s165
                  %s201 = sphi %s161, %s161
                $region54: #{tpu_custom_call.1} parent=50 // loop_header_branch
                  %198 = sbr.rel (%p196) target = $region58
                $region55: #{tpu_custom_call.1} parent=50 // loop_body
                  %v202 = vld [vmem:[%s200] sm:$0xff]
                  %203 = vst [vmem:[%s201] sm:$0xff] %v202
                  %v204 = vld [vmem:[%s200 + $0x10] sm:$0xff]
                  %205 = vst [vmem:[%s201 + $0x8] sm:$0xff] %v204
                  %v206 = vld [vmem:[%s200 + $0x20] sm:$0xff]
                  %207 = vst [vmem:[%s201 + $0x10] sm:$0xff] %v206
                  %v208 = vld [vmem:[%s200 + $0x30] sm:$0xff]
                  %209 = vst [vmem:[%s201 + $0x18] sm:$0xff] %v208
                  %v210 = vld [vmem:[%s200 + $0x40] sm:$0xff]
                  %211 = vst [vmem:[%s201 + $0x20] sm:$0xff] %v210
                $region56: #{tpu_custom_call.1} parent=50 // loop_footer
                  %s199 = sadd.s32 1, %s195
                $region57: #{tpu_custom_call.1} parent=50 // loop_footer_branch
                  %194 = sbr.rel target = $region53
                $region58: #{tpu_custom_call.1} parent=50 // loop_exit
                  _
              $region51: #{tpu_custom_call.1} parent=35 // pred_fallthru
                _
              // Predicated region
              $region59: #{tpu_custom_call.1} parent=35 // pred_check
                _
              $region60: #{tpu_custom_call.1} parent=35 // pred_check_branch
                %213 = sbr.rel target = $region62
              $region61: #{tpu_custom_call.1} parent=35 // pred_region
                _
              $region62: #{tpu_custom_call.1} parent=35 // pred_fallthru
                _
            $region36: #{tpu_custom_call.1} parent=31 // pred_fallthru
              _
            // Predicated region
            $region37: #{tpu_custom_call.1} parent=31 // pred_check
              _
            $region38: #{tpu_custom_call.1} parent=31 // pred_check_branch
              %171 = sbr.rel target = $region40
            $region39: #{tpu_custom_call.1} parent=31 // pred_region
              %s173 = ssub.s32 256, 1
              loop: start=0, step=1, limit=1
              $region41: #{tpu_custom_call.1} parent=39 // loop_pre_header
                _
              $region42: #{tpu_custom_call.1} parent=39 // loop_header
                %s175 = sphi 0, %s179
                %p176 = scmp.ge.s32.totalorder %s175, 1
                %s180 = sphi %s165, %s165
                %s181 = sphi %s161, %s161
              $region43: #{tpu_custom_call.1} parent=39 // loop_header_branch
                %178 = sbr.rel (%p176) target = $region47
              $region44: #{tpu_custom_call.1} parent=39 // loop_body
                %v182 = vld [vmem:[%s180] sm:%s173]
                %183 = vst [vmem:[%s181] sm:%s173] %v182
                %v184 = vld [vmem:[%s180 + $0x10] sm:%s173]
                %185 = vst [vmem:[%s181 + $0x8] sm:%s173] %v184
                %v186 = vld [vmem:[%s180 + $0x20] sm:%s173]
                %187 = vst [vmem:[%s181 + $0x10] sm:%s173] %v186
                %v188 = vld [vmem:[%s180 + $0x30] sm:%s173]
                %189 = vst [vmem:[%s181 + $0x18] sm:%s173] %v188
                %v190 = vld [vmem:[%s180 + $0x40] sm:%s173]
                %191 = vst [vmem:[%s181 + $0x20] sm:%s173] %v190
              $region45: #{tpu_custom_call.1} parent=39 // loop_footer
                %s179 = sadd.s32 1, %s175
              $region46: #{tpu_custom_call.1} parent=39 // loop_footer_branch
                %174 = sbr.rel target = $region42
              $region47: #{tpu_custom_call.1} parent=39 // loop_exit
                _
            $region40: #{tpu_custom_call.1} parent=31 // pred_fallthru
              _
          $region32: #{tpu_custom_call.1} parent=27 // pred_fallthru
            _
          %214 = vnop
        $region28: #{tpu_custom_call.1} parent=19 // pred_fallthru
          _
      $region20: #{tpu_custom_call.1} parent=5 // pred_fallthru
        _
      %p215 = scmp.le.s32.totalorder 1, %s12
      %p216 = scmp.lt.s32.totalorder %s12, 5
      %p217 = pnand %p215, %p216
      %p218 = pneg %p217
      // Predicated region
      $region63: #{tpu_custom_call.1} parent=5 // pred_check
        _
      $region64: #{tpu_custom_call.1} parent=5 // pred_check_branch
        %220 = sbr.rel (%p217) target = $region66
      $region65: #{tpu_custom_call.1} parent=5 // pred_region
        %s221 = ssub.s32 %s12, 1
        %s222 = sand.u32 %s86, 1
        %s223 = sand.u32 %s86, 1
        %s224 = smul.addr %s223, 40
        %s225 = scalar_lea.vmem [#allocation3], %s224
        // Predicated region
        $region67: #{tpu_custom_call.1} parent=65 // pred_check
          %p226 = pneg %p99
        $region68: #{tpu_custom_call.1} parent=65 // pred_check_branch
          %228 = sbr.rel (%p226) target = $region70
        $region69: #{tpu_custom_call.1} parent=65 // pred_region
          _
        $region70: #{tpu_custom_call.1} parent=65 // pred_fallthru
          _
        %p229 = pneg %p45
        %p230 = pneg %p42
        %p231 = scmp.lt.s32.totalorder %s21, 1
        %s232 = scalar_select %p231, %s21, 1
        %s233 = scalar_lea.vmem %s1, %s232
        %p234 = pneg %p71
        %p235 = pneg %p68
        %s236 = sand.u32 %s86, 1
        %s237 = sand.u32 %s86, 1
        %s238 = smul.addr %s237, 40
        %s239 = scalar_lea.vmem [#allocation3], %s238
        %p240 = pneg %p99
        %p241 = pneg %p96
        %p242 = pneg %p127
        %p243 = pneg %p124
        %s244 = sand.u32 %s114, 1
        %s245 = scalar_lea.sflag [#allocation5], %s244
        %s246 = sand.u32 %s114, 1
        %s247 = smul.addr %s246, 8
        %s248 = scalar_lea.vmem [#allocation4], %s247
        %p249 = scmp.lt.s32.totalorder %s21, 1
        %s250 = scalar_select %p249, %s21, 1
        %s251 = scalar_lea.vmem %s1, %s250
        %p252 = scmp.eq.s32.totalorder %s22, 0
        // Predicated region
        $region71: #{tpu_custom_call.1} parent=65 // pred_check
          %p253 = pneg %p252
        $region72: #{tpu_custom_call.1} parent=65 // pred_check_branch
          %255 = sbr.rel (%p253) target = $region74
        $region73: #{tpu_custom_call.1} parent=65 // pred_region
          %v256 = vld [vmem:[%s0] sm:$0xff]
          %v257 = vmul.f32 %v256, 0.16666667
          %v258 = vld [vmem:[%s251] sm:$0x1]
          %v260 = vlaneseq
          %v261 = vshrl.u32 %v260, 7
          %v262 = vsub.s32 0, %v261
          %v263 = vrot.slane %v258, %v262
          %v265 = vmul.f32 %v257, %v263
          %v266 = vmul.f32 %v265, %v265
          %vm267 = vcmask 293888
          %v268 = vsel %vm267, %v266, 0.0
          %269 = vadd.xlane.f32.xlu0 %v268
          %v270 = vpop.xlane.xlu0 %269
          %v271 = vadd.f32 %v270, 1e-08
          %v272 = vrsqrt.pop %v271
          %v273 = vmul.f32 %v265, %v272
          %274 = vst.msk [vmem:[#allocation2] sm:$0xff] %vm267, %v273
        $region74: #{tpu_custom_call.1} parent=65 // pred_fallthru
          _
        %v275 = vld [vmem:[#allocation2] sm:$0xff]
        %v276 = vld [vmem:[%s225] sm:$0xff]
        %v277 = vld [vmem:[%s225 + $0x8] sm:$0xff]
        %v278 = vld [vmem:[%s225 + $0x10] sm:$0xff]
        %v279 = vld [vmem:[%s225 + $0x18] sm:$0xff]
        %v280 = vld [vmem:[%s225 + $0x20] sm:$0xf]
        %vm281 = vcmask 293888
        %v283 = vsel %vm281, %v275, 0
        %vm285 = vcmask 1043456
        %v287 = vsel %vm285, %v280, 0
        %289 = vmatprep.subr.mxu0 0.0
        %290 = vmatpush1.msra.mxu0 0.0
        %291 = vmatprep.subr.mxu0 0.0
        %292 = vmatpush1.msra.mxu0 0.0
        %293 = vmatprep.subr.mxu0 0.0
        %294 = vmatpush1.msra.mxu0 0.0
        %295 = vmatprep.subr.mxu0 0.0
        %296 = vmatpush1.msra.mxu0 0.0
        %297 = vmatprep.subr.mxu0 0.0
        %298 = vmatpush1.msra.mxu0 0.0
        %299 = vmatprep.subr.mxu0 0.0
        %300 = vmatpush1.msra.mxu0 0.0
        %301 = vmatprep.subr.mxu0 0.0
        %302 = vmatpush1.msra.mxu0 0.0
        %303 = vmatprep.subr.mxu0 0.0
        %304 = vmatpush1.msra.mxu0 0.0
        %305 = vmatprep.subr.mxu0 0.0
        %306 = vmatpush1.msra.mxu0 0.0
        %307 = vmatprep.subr.mxu0 0.0
        %308 = vmatpush1.msra.mxu0 0.0
        %309 = vmatprep.subr.mxu0 0.0
        %310 = vmatpush1.msra.mxu0 0.0
        %311 = vmatprep.subr.mxu0 0.0
        %312 = vmatpush1.msra.mxu0 %v287
        %313 = vmatprep.subr.mxu0 0.0
        %314 = vmatpush1.msra.mxu0 %v279
        %315 = vmatprep.subr.mxu0 0.0
        %316 = vmatpush1.msra.mxu0 %v278
        %317 = vmatprep.subr.mxu0 0.0
        %318 = vmatpush1.msra.mxu0 %v277
        %319 = vmatprep.subr.mxu0 0.0
        %320 = vmatpush1.msra.mxu0 %v276
        %321 = vmatprep.subr.mxu0 0.0
        %322 = vmatpush2.msra.mxu0 0.0
        %323 = vmatprep.subr.mxu0 0.0
        %324 = vmatpush2.msra.mxu0 0.0
        %325 = vmatprep.subr.mxu0 0.0
        %326 = vmatpush2.msra.mxu0 0.0
        %327 = vmatprep.subr.mxu0 0.0
        %328 = vmatpush2.msra.mxu0 0.0
        %329 = vmatprep.subr.mxu0 0.0
        %330 = vmatpush2.msra.mxu0 0.0
        %331 = vmatprep.subr.mxu0 0.0
        %332 = vmatpush2.msra.mxu0 0.0
        %333 = vmatprep.subr.mxu0 0.0
        %334 = vmatpush2.msra.mxu0 0.0
        %335 = vmatprep.subr.mxu0 0.0
        %336 = vmatpush2.msra.mxu0 0.0
        %337 = vmatprep.subr.mxu0 0.0
        %338 = vmatpush2.msra.mxu0 0.0
        %339 = vmatprep.subr.mxu0 0.0
        %340 = vmatpush2.msra.mxu0 0.0
        %341 = vmatprep.subr.mxu0 0.0
        %342 = vmatpush2.msra.mxu0 0.0
        %343 = vmatprep.subr.mxu0 0.0
        %344 = vmatpush2.msra.mxu0 0.0
        %345 = vmatprep.subr.mxu0 0.0
        %346 = vmatpush2.msra.mxu0 0.0
        %347 = vmatprep.subr.mxu0 0.0
        %348 = vmatpush2.msra.mxu0 0.0
        %349 = vmatprep.subr.mxu0 0.0
        %350 = vmatpush2.msra.mxu0 0.0
        %351 = vmatprep.subr.mxu0 0.0
        %352 = vmatpush2.msra.mxu0 0.0
        %353 = vmatprep.mubr.f32.mxu0 0.0
        %354 = vmatmul.mubr.f32.gmra.mxu0 %v283
        %v355 = vpop.f32.mrf.mxu0
        %v356 = vadd.f32 0.0, %v355
        %v357 = vpop.f32.mrf.mxu0
        %358 = vdwg.mxu0
        %359 = vst [vmem:[%s248] sm:$0xff] %v356
        %s360 = sand.u32 %s114, 1
        %s361 = scalar_lea.sflag [#allocation5], %s360
        %s362 = sand.u32 %s114, 1
        %s363 = smul.addr %s362, 8
        %s364 = scalar_lea.vmem [#allocation4], %s363
        // Predicated region
        $region75: #{tpu_custom_call.1} parent=65 // pred_check
          %p365 = pneg %p124
        $region76: #{tpu_custom_call.1} parent=65 // pred_check_branch
          %367 = sbr.rel (%p365) target = $region78
        $region77: #{tpu_custom_call.1} parent=65 // pred_region
          %s369 = ssub.s32 128, 128
          %370 = vsyncadd %s361, %s369
          %s371 = smul.addr %s21, 2
          %s372 = sadd.s32 %s22, %s371
          %s373 = smul.addr %s372, 128
          %s374 = scalar_lea.hbm %s3, %s373
          %s376 = sshll.u32 %s364, 4
          %s377 = int_to_ptr.vmem [resolvable:$true] %s376
          %379 = dma.vmem_to_hbm [thread:$0]  %s377, 128, %s374, %s361
        $region78: #{tpu_custom_call.1} parent=65 // pred_fallthru
          _
      $region66: #{tpu_custom_call.1} parent=5 // pred_fallthru
        _
      %p380 = scmp.le.s32.totalorder 2, %s12
      // Predicated region
      $region79: #{tpu_custom_call.1} parent=5 // pred_check
        %p381 = pneg %p380
      $region80: #{tpu_custom_call.1} parent=5 // pred_check_branch
        %383 = sbr.rel (%p381) target = $region82
      $region81: #{tpu_custom_call.1} parent=5 // pred_region
        %s384 = ssub.s32 %s12, 2
        // Predicated region
        $region83: #{tpu_custom_call.1} parent=81 // pred_check
          %p385 = pneg %p130
        $region84: #{tpu_custom_call.1} parent=81 // pred_check_branch
          %387 = sbr.rel (%p385) target = $region86
        $region85: #{tpu_custom_call.1} parent=81 // pred_region
          %s388 = sand.u32 %s115, 1
          %s389 = scalar_lea.sflag [#allocation5], %s388
          %s390 = sand.u32 %s115, 1
          %s391 = smul.addr %s390, 8
          %s392 = scalar_lea.vmem [#allocation4], %s391
          %393 = dma.done %s389, 128
        $region86: #{tpu_custom_call.1} parent=81 // pred_fallthru
          _
      $region82: #{tpu_custom_call.1} parent=5 // pred_fallthru
        _
    $region6: #{tpu_custom_call.1} parent=1 // loop_footer
      %s16 = sadd.s32 1, %s12
    $region7: #{tpu_custom_call.1} parent=1 // loop_footer_branch
      %11 = sbr.rel target = $region3
    $region8: #{tpu_custom_call.1} parent=1 // loop_exit
      _
    %394 = vsyncpa [#allocation5], 1
    %s395 = scalar_lea.sflag [#allocation5], 1
    %396 = vsyncpa %s395, 1

</llo_original>
